<compile_context>
chip_gen: v7x
topology: tpu7x:2x2x1
jax: 0.10.0
libtpu: 0.0.40
codegen_flags: <defaults>
</compile_context>

<pallas_src>
import math
from functools import partial

import jax
import jax.numpy as jnp
from jax.experimental import pallas as pl
from jax.experimental.pallas import tpu as pltpu


def _round_up(x: int, m: int) -> int:
    return ((x + m - 1) // m) * m


def _vmem_capacity_bytes() -> int:
    """Physical per-core VMEM; safe fallback to the smallest generation (v7x)."""
    try:
        info = pltpu.get_tpu_info()
        cap = getattr(info, "vmem_capacity_bytes", None)
        if cap:
            return int(cap)
    except Exception:
        pass
    return 64 * 1024 * 1024


# ------------------------------------------------------------------
# Pallas kernel: bias-free linear projection (Idefics3SimpleMLP.proj)
# ------------------------------------------------------------------
def _proj_kernel(x_ref, w_ref, o_ref):
    # x_ref: (tm, K) bf16   w_ref: (K, tn) bf16   o_ref: (tm, tn) out_dtype
    o_ref[...] = jnp.dot(
        x_ref[...], w_ref[...], preferred_element_type=jnp.float32
    ).astype(o_ref.dtype)


def modality_projection(x2d: jax.Array, w_bf16: jax.Array, *,
                        out_dtype=jnp.bfloat16) -> jax.Array:
    """(M, K) @ (K, N_pad) -> (M, N_pad).

    bf16 MXU inputs, f32 accumulation, bf16 (default) stores.  The weight is
    expected pre-cast to bf16 with its N dim pre-padded to a multiple of 128.
    """
    M, K = x2d.shape
    K2, N_pad = w_bf16.shape
    assert K == K2 and N_pad % 128 == 0

    out_size = jnp.dtype(out_dtype).itemsize
    vmem_cap = _vmem_capacity_bytes()
    budget = int(0.70 * vmem_cap)

    # --- activations: cast + pad rows to the bf16 sublane tile --------------
    M_pad = _round_up(M, 16)
    xb = x2d.astype(jnp.bfloat16)
    if M_pad != M:
        xb = jnp.pad(xb, ((0, M_pad - M), (0, 0)))

    # Keep the (small) activation matrix resident in VMEM whenever it fits so
    # it is DMA'd from HBM exactly once instead of once per N tile.
    x_resident_bytes = 2 * M_pad * K * 2          # conservatively assume 2 bufs
    resident = x_resident_bytes <= int(0.45 * vmem_cap)

    if resident:
        tm = M_pad
    else:
        tm = min(256, M_pad)                      # no artificial halving of tm
        M_pad = _round_up(M_pad, tm)
        if M_pad != xb.shape[0]:
            xb = jnp.pad(xb, ((0, M_pad - xb.shape[0]), (0, 0)))

    # --- pick the widest lane-dense N tile that fits the VMEM budget --------
    tn = 128
    for cand in (1024, 512, 256, 128):
        if N_pad % cand:
            continue
        x_b = x_resident_bytes if resident else 2 * tm * K * 2
        w_b = 2 * K * cand * 2                    # weight double-buffered bf16
        o_b = 2 * tm * cand * out_size            # output double-buffered
        if x_b + w_b + o_b <= budget:
            tn = cand
            break
    n_tiles = N_pad // tn

    # --- VMEM limit from actual buffer bytes (+25% Mosaic headroom) ---------
    x_b = x_resident_bytes if resident else 2 * tm * K * 2
    need = x_b + 2 * K * tn * 2 + 2 * tm * tn * out_size
    vmem_limit = int(min(vmem_cap - 4 * 1024 * 1024,
                         max(int(need * 1.25), 8 * 1024 * 1024)))

    if resident:
        grid = (n_tiles,)
        in_specs = [
            pl.BlockSpec((M_pad, K), lambda j: (0, 0)),   # constant index: 1 DMA
            pl.BlockSpec((K, tn), lambda j: (0, j)),      # weight streamed once
        ]
        out_specs = pl.BlockSpec((M_pad, tn), lambda j: (0, j))
        dims = ("parallel",)
        act_bytes = M_pad * K * 2                         # activations read once
    else:
        m_tiles = M_pad // tm
        grid = (n_tiles, m_tiles)                         # N outer, M inner
        in_specs = [
            pl.BlockSpec((tm, K), lambda j, i: (i, 0)),
            # weight index ignores the inner M axis -> fetched once per N tile
            pl.BlockSpec((K, tn), lambda j, i: (0, j)),
        ]
        out_specs = pl.BlockSpec((tm, tn), lambda j, i: (i, j))
        # N is the core-parallel axis; M inner is "arbitrary" so a v7x megacore
        # split never duplicates the weight stream.
        dims = ("parallel", "arbitrary")
        act_bytes = n_tiles * M_pad * K * 2               # re-read per N tile

    cost = pl.CostEstimate(
        flops=2 * M_pad * K * N_pad,
        transcendentals=0,
        bytes_accessed=act_bytes + K * N_pad * 2 + M_pad * N_pad * out_size,
    )

    # TODO(synk): if K ever grows so large that even a (K, 128) bf16 weight tile
    # does not fit VMEM, add a K grid axis ("arbitrary", last) with a VMEM f32
    # accumulator scratch (P3).
    out = pl.pallas_call(
        _proj_kernel,
        out_shape=jax.ShapeDtypeStruct((M_pad, N_pad), out_dtype),
        grid_spec=pltpu.PrefetchScalarGridSpec(
            num_scalar_prefetch=0,
            grid=grid,
            in_specs=in_specs,
            out_specs=out_specs,
        ),
        compiler_params=pltpu.CompilerParams(
            dimension_semantics=dims,
            vmem_limit_bytes=vmem_limit,
        ),
        cost_estimate=cost,
    )(xb, w_bf16)

    if M_pad != M:
        out = out[:M, :]
    return out


# ------------------------------------------------------------------
# Connector glue (pure reshapes / transposes — stays in XLA, fused under jit)
# ------------------------------------------------------------------
def pixel_shuffle(x: jax.Array, scale_factor: int = 2) -> jax.Array:
    """Exact port of Idefics3Connector.pixel_shuffle (torch view/permute/reshape)."""
    bsz, seq, embed_dim = x.shape
    height = width = int(math.isqrt(seq))
    assert height * width == seq, "pixel_shuffle expects a square patch grid"
    assert height % scale_factor == 0, "grid side must be divisible by scale_factor"
    x = x.reshape(bsz, height, width // scale_factor, embed_dim * scale_factor)
    x = jnp.transpose(x, (0, 2, 1, 3))
    x = x.reshape(
        bsz, width // scale_factor, height // scale_factor,
        embed_dim * scale_factor ** 2,
    )
    x = jnp.transpose(x, (0, 2, 1, 3))
    x = x.reshape(bsz, seq // scale_factor ** 2, embed_dim * scale_factor ** 2)
    return x


@partial(jax.jit, static_argnames=("scale_factor", "n_out"))
def _connector_forward(image_hidden_states: jax.Array, proj_w_bf16: jax.Array, *,
                       scale_factor: int, n_out: int) -> jax.Array:
    # Cast to bf16 BEFORE the pixel_shuffle transposes so the materialized
    # intermediate is half the HBM bytes; jitted together with the pallas_call
    # so the layout copy is scheduled with the kernel's input DMA.
    # TODO(synk): fold the pixel_shuffle gather directly into the kernel's
    # input BlockSpec / strided DMA to eliminate the materialized transpose.
    x = pixel_shuffle(image_hidden_states.astype(jnp.bfloat16), scale_factor)
    bsz, seq_out, in_dim = x.shape
    out2d = modality_projection(x.reshape(bsz * seq_out, in_dim), proj_w_bf16)
    return out2d[:, :n_out].reshape(bsz, seq_out, n_out)


class Idefics3ConnectorPallas:
    """Idefics3Connector: pixel_shuffle + Idefics3SimpleMLP (bias-free linear)."""

    def __init__(self, vision_hidden: int, text_hidden: int, scale_factor: int,
                 key: jax.Array):
        self.scale_factor = scale_factor
        self.output_size = text_hidden
        input_size = vision_hidden * scale_factor ** 2
        # Deterministic synthetic weight (ReplicatedLinear, bias=False).
        w = (
            jax.random.normal(key, (input_size, text_hidden), dtype=jnp.float32)
            * (1.0 / math.sqrt(input_size))
        )
        # Pre-pad (lane-dense N) + pre-cast to bf16 ONCE at init so per-call
        # weight padding/casting costs nothing at steady state.
        n_pad = _round_up(text_hidden, 128)
        if n_pad != text_hidden:
            w = jnp.pad(w, ((0, 0), (0, n_pad - text_hidden)))
        self.proj_w = w.astype(jnp.bfloat16)

    def __call__(self, image_hidden_states: jax.Array) -> jax.Array:
        return _connector_forward(image_hidden_states, self.proj_w,
                                  scale_factor=self.scale_factor,
                                  n_out=self.output_size)


class Idefics3ModelPallas:
    """Partial Idefics3Model: the _process_image_input connector path.

    _process_image_input('image_embeds')  -> passthrough (as in torch code)
    _process_image_input('pixel_values')  -> vision tower (TODO) + connector
    """

    def __init__(self, vision_hidden: int = 32, text_hidden: int = 128,
                 scale_factor: int = 2, key: jax.Array = None):
        if key is None:
            key = jax.random.PRNGKey(1)
        self.connector = Idefics3ConnectorPallas(
            vision_hidden, text_hidden, scale_factor, key
        )

    def process_image_features(self, image_hidden_states: jax.Array) -> jax.Array:
        # image_hidden_states: (batch*num_images, num_patches, vision_hidden),
        # i.e. the Idefics3VisionTransformer output.
        return self.connector(image_hidden_states)

    # TODO(synk): forward(input_ids, positions, ...) requires the full
    # LlamaModel text backbone and is not reimplemented here.


if __name__ == "__main__":
    key = jax.random.PRNGKey(0)
    k_x, k_w = jax.random.split(key)

    # Small shapes consistent with the module:
    #   vision hidden_size = 32, scale_factor = 2, text hidden_size = 128
    #   num_patches = 64 (an 8x8 patch grid), batch*num_images = 2
    B, S, D = 2, 64, 32
    image_hidden_states = jax.random.normal(k_x, (B, S, D), dtype=jnp.float32)

    model = Idefics3ModelPallas(vision_hidden=D, text_hidden=128,
                                scale_factor=2, key=k_w)

    out = model.process_image_features(image_hidden_states)
    out = jax.block_until_ready(out)

    # Reference check (plain JAX, f32) for the connector semantics.  Inputs and
    # stores are bf16 in the kernel path, so allow quantization-level tolerance.
    ref = jnp.einsum(
        "bsk,kn->bsn",
        pixel_shuffle(image_hidden_states, 2),
        model.connector.proj_w.astype(jnp.float32)[:, :128],
    )
    assert out.shape == (B, S // 4, 128), out.shape
    assert out.dtype == jnp.bfloat16, out.dtype
    assert jnp.allclose(out.astype(jnp.float32), ref, atol=5e-2, rtol=5e-2)

    print("KERNEL_OK")
</pallas_src>

<mosaic_0001>
module attributes {stable_mosaic.version = 11 : i64} {
  func.func @_proj_kernel(%arg0: i32, %arg1: memref<32x128xbf16, #tpu.memory_space<vmem>>, %arg2: memref<128x128xbf16, #tpu.memory_space<vmem>>, %arg3: memref<32x128xbf16, #tpu.memory_space<vmem>>) attributes {dimension_semantics = [#tpu.dimension_semantics<parallel>], iteration_bounds = array<i64: 1>, scalar_prefetch = 0 : i64, scratch_operands = 0 : i64, tpu.core_type = #tpu.core_type<tc>, window_params = [{pipeline_mode = #tpu.pipeline_mode<synchronous>, transform_indices = @transform_0, window_bounds = array<i64: 32, 128>}, {transform_indices = @transform_1, window_bounds = array<i64: 128, 128>}, {transform_indices = @transform_2, window_bounds = array<i64: 32, 128>}]} {
    %c0 = arith.constant 0 : index
    %c0_0 = arith.constant 0 : index
    %0 = vector.load %arg1[%c0, %c0_0] : memref<32x128xbf16, #tpu.memory_space<vmem>>, vector<32x128xbf16>
    %c0_1 = arith.constant 0 : index
    %c0_2 = arith.constant 0 : index
    %1 = vector.load %arg2[%c0_1, %c0_2] : memref<128x128xbf16, #tpu.memory_space<vmem>>, vector<128x128xbf16>
    %cst = arith.constant dense<0.000000e+00> : vector<32x128xf32>
    %2 = tpu.matmul %0, %1, %cst {dimension_numbers = #tpu.dot_dimension_numbers<[1], [0], [0], [1], [0, 0, 1, 1], [], []>} : vector<32x128xbf16>, vector<128x128xbf16>, vector<32x128xf32> -> vector<32x128xf32>
    %3 = arith.truncf %2 : vector<32x128xf32> to vector<32x128xbf16>
    %c0_3 = arith.constant 0 : index
    %c0_4 = arith.constant 0 : index
    %4 = vector.load %arg3[%c0_3, %c0_4] : memref<32x128xbf16, #tpu.memory_space<vmem>>, vector<32x128xbf16>
    tpu.vector_store %arg3[%c0_3, %c0_4], %3 {strides = array<i32>} : memref<32x128xbf16, #tpu.memory_space<vmem>>, vector<32x128xbf16>,
    return
  }
  func.func @transform_0(%arg0: i32) -> (i32, i32) {
    %c0_i32 = arith.constant 0 : i32
    %c0_i32_0 = arith.constant 0 : i32
    %c0_i32_1 = arith.constant 0 : i32
    return %c0_i32, %c0_i32_0 : i32, i32
  }
  func.func @transform_1(%arg0: i32) -> (i32, i32) {
    %c0_i32 = arith.constant 0 : i32
    %c0_i32_0 = arith.constant 0 : i32
    return %c0_i32, %arg0 : i32, i32
  }
  func.func @transform_2(%arg0: i32) -> (i32, i32) {
    %c0_i32 = arith.constant 0 : i32
    %c0_i32_0 = arith.constant 0 : i32
    return %c0_i32, %arg0 : i32, i32
  }
}

</mosaic_0001>

<llo_original>
// kernel: _connector_forward.1
$region0: #{_connector_forward.1}
  #allocation0 [shape = 'u32[]', space=smem, size = 0x4, offset = 0x4, fixed_abs, tag = 'smem constant byte address 0x4 - core index']
  #allocation1 [shape = 'u32[144,128]{1,0:T(1,128)}', space=vmem, size = 0x12000, scoped, tag = 'internal scratch']
  %s0 = inlined_call_operand.vmem [shape: bf16[32,128], index: 0, kind: input, shape index: {}]
  %s1 = inlined_call_operand.vmem [shape: bf16[128,128], index: 1, kind: input, shape index: {}]
  %s2 = inlined_call_operand.hbm [shape: bf16[32,128], index: 2, kind: output, shape index: {}]
  %s3 = sld [smem:[#allocation0]]
  $region18: #{_connector_forward.1} parent=0
    _
  %s5 = ssub.s32 1, %s3
  %s6 = scalar_select 0, %s5, %s3
  $region1: #{_connector_forward.1} parent=0
    #allocation2 [shape = 'u8[8192]{0}', space=vmem, size = 0x2000, scoped, tag = 'output window, operand 0, single buffered']
    #allocation3 [shape = 's32[1]{0}', space=sflag, size = 0x4, scoped, tag = 'scoped memory for _connector_forward.1']
    %7 = vsyncpa [#allocation3], 0
    // Predicated region
    $region2: #{_connector_forward.1} parent=1 // pred_check
      _
    $region3: #{_connector_forward.1} parent=1 // pred_check_branch
      %9 = sbr.rel (0) target = $region5
    $region4: #{_connector_forward.1} parent=1 // pred_region
      _
    $region5: #{_connector_forward.1} parent=1 // pred_fallthru
      _
    // Predicated region
    $region6: #{_connector_forward.1} parent=1 // pred_check
      _
    $region7: #{_connector_forward.1} parent=1 // pred_check_branch
      %11 = sbr.rel (0) target = $region9
    $region8: #{_connector_forward.1} parent=1 // pred_region
      _
    $region9: #{_connector_forward.1} parent=1 // pred_fallthru
      _
    %v13 = vld [vmem:[%s0] sm:$0xf]
    %v14 = vld [vmem:[%s0 + $0x4] sm:$0xf]
    %v15 = vld [vmem:[%s0 + $0x8] sm:$0xf]
    %v16 = vld [vmem:[%s0 + $0xc] sm:$0xf]
    %v17 = vld [vmem:[%s1] sm:$0xf]
    %v18 = vld [vmem:[%s1 + $0x4] sm:$0xf]
    %v19 = vld [vmem:[%s1 + $0x8] sm:$0xf]
    %v20 = vld [vmem:[%s1 + $0xc] sm:$0xf]
    %v21 = vld [vmem:[%s1 + $0x10] sm:$0xf]
    %v22 = vld [vmem:[%s1 + $0x14] sm:$0xf]
    %v23 = vld [vmem:[%s1 + $0x18] sm:$0xf]
    %v24 = vld [vmem:[%s1 + $0x1c] sm:$0xf]
    %v25 = vld [vmem:[%s1 + $0x20] sm:$0xf]
    %v26 = vld [vmem:[%s1 + $0x24] sm:$0xf]
    %v27 = vld [vmem:[%s1 + $0x28] sm:$0xf]
    %v28 = vld [vmem:[%s1 + $0x2c] sm:$0xf]
    %v29 = vld [vmem:[%s1 + $0x30] sm:$0xf]
    %v30 = vld [vmem:[%s1 + $0x34] sm:$0xf]
    %v31 = vld [vmem:[%s1 + $0x38] sm:$0xf]
    %v32 = vld [vmem:[%s1 + $0x3c] sm:$0xf]
    %v37 = vunpack.c.l.b16 %v13
    %v38 = vunpack.c.l.b16 %v14
    %v39 = vunpack.c.l.b16 %v15
    %v40 = vunpack.c.l.b16 %v16
    %v41 = vpack.c.b16 %v38, %v37
    %v42 = vpack.c.b16 %v40, %v39
    %v61 = vunpack.c.l.b16 %v17
    %v62 = vunpack.c.l.b16 %v18
    %v63 = vunpack.c.l.b16 %v19
    %v64 = vunpack.c.l.b16 %v20
    %v65 = vunpack.c.l.b16 %v21
    %v66 = vunpack.c.l.b16 %v22
    %v67 = vunpack.c.l.b16 %v23
    %v68 = vunpack.c.l.b16 %v24
    %v69 = vunpack.c.l.b16 %v25
    %v70 = vunpack.c.l.b16 %v26
    %v71 = vunpack.c.l.b16 %v27
    %v72 = vunpack.c.l.b16 %v28
    %v73 = vunpack.c.l.b16 %v29
    %v74 = vunpack.c.l.b16 %v30
    %v75 = vunpack.c.l.b16 %v31
    %v76 = vunpack.c.l.b16 %v32
    %v77 = vpack.c.b16 %v62, %v61
    %v78 = vpack.c.b16 %v64, %v63
    %v79 = vpack.c.b16 %v66, %v65
    %v80 = vpack.c.b16 %v68, %v67
    %v81 = vpack.c.b16 %v70, %v69
    %v82 = vpack.c.b16 %v72, %v71
    %v83 = vpack.c.b16 %v74, %v73
    %v84 = vpack.c.b16 %v76, %v75
    %93 = vmatprep.subr.bf16.mxu0 0
    %94 = vmatpush1.bf16.msra.mxu0 %v77
    %95 = vmatprep.subr.bf16.mxu0 0
    %96 = vmatpush1.bf16.msra.mxu0 %v78
    %97 = vmatprep.subr.bf16.mxu0 0
    %98 = vmatpush1.bf16.msra.mxu0 %v79
    %99 = vmatprep.subr.bf16.mxu0 0
    %100 = vmatpush1.bf16.msra.mxu0 %v80
    %101 = vmatprep.subr.bf16.mxu0 0
    %102 = vmatpush1.bf16.msra.mxu0 %v81
    %103 = vmatprep.subr.bf16.mxu0 0
    %104 = vmatpush1.bf16.msra.mxu0 %v82
    %105 = vmatprep.subr.bf16.mxu0 0
    %106 = vmatpush1.bf16.msra.mxu0 %v83
    %107 = vmatprep.subr.bf16.mxu0 0
    %108 = vmatpush1.bf16.msra.mxu0 %v84
    %109 = vmatprep.subr.bf16.mxu0 0
    %110 = vmatpush1.bf16.msra.mxu0 0
    %111 = vmatprep.subr.bf16.mxu0 0
    %112 = vmatpush1.bf16.msra.mxu0 0
    %113 = vmatprep.subr.bf16.mxu0 0
    %114 = vmatpush1.bf16.msra.mxu0 0
    %115 = vmatprep.subr.bf16.mxu0 0
    %116 = vmatpush1.bf16.msra.mxu0 0
    %117 = vmatprep.subr.bf16.mxu0 0
    %118 = vmatpush1.bf16.msra.mxu0 0
    %119 = vmatprep.subr.bf16.mxu0 0
    %120 = vmatpush1.bf16.msra.mxu0 0
    %121 = vmatprep.subr.bf16.mxu0 0
    %122 = vmatpush1.bf16.msra.mxu0 0
    %123 = vmatprep.subr.bf16.mxu0 0
    %124 = vmatpush1.bf16.msra.mxu0 0
    %125 = vmatprep.mubr.bf16.mxu0 0
    %126 = vmatmul.mubr.bf16.gmra.mrb[0].mxu0 %v41
    %v127 = vpop.f32.mrb[0].mxu0
    %v128 = vadd.f32 0.0, %v127
    %v129 = vpop.f32.mrb[0].mxu0
    %v130 = vpop.f32.mrb[0].mxu0
    %v131 = vadd.f32 0.0, %v130
    %v132 = vpop.f32.mrb[0].mxu0
    %133 = vmatprep.mubr.bf16.mxu0 0
    %134 = vmatmul.mubr.bf16.gmra.mrb[0].mxu0 %v42
    %v135 = vpop.f32.mrb[0].mxu0
    %v136 = vadd.f32 0.0, %v135
    %v137 = vpop.f32.mrb[0].mxu0
    %v138 = vpop.f32.mrb[0].mxu0
    %v139 = vadd.f32 0.0, %v138
    %v140 = vpop.f32.mrb[0].mxu0
    %141 = vdwg.mxu0
    %v142 = vpack.c.bf16 %v131, %v128
    %v143 = vpack.c.bf16 %v139, %v136
    %v146 = vunpack.c.l.b16 %v142
    %v147 = vunpack.c.h.b16 %v142
    %v148 = vunpack.c.l.b16 %v143
    %v149 = vunpack.c.h.b16 %v143
    %v150 = vpack.c.b16 %v146, %v146
    %v151 = vpack.c.b16 %v147, %v147
    %v152 = vpack.c.b16 %v148, %v148
    %v153 = vpack.c.b16 %v149, %v149
    %158 = vst [vmem:[#allocation2] sm:$0xf] %v150
    %159 = vst [vmem:[#allocation2 + $0x4] sm:$0xf] %v151
    %160 = vst [vmem:[#allocation2 + $0x8] sm:$0xf] %v152
    %161 = vst [vmem:[#allocation2 + $0xc] sm:$0xf] %v153
    // Predicated region
    $region10: #{_connector_forward.1} parent=1 // pred_check
      _
    $region11: #{_connector_forward.1} parent=1 // pred_check_branch
      %163 = sbr.rel (0) target = $region13
    $region12: #{_connector_forward.1} parent=1 // pred_region
      %s165 = ssub.s32 256, 256
      %166 = vsyncadd [#allocation3], %s165
      %s167 = sshll.u32 [#allocation2], 4
      %s168 = int_to_ptr.vmem [resolvable:$true] %s167
      %173 = dma.vmem_to_hbm [thread:$0]  %s168, 256, %s2, [#allocation3], 64, 64, 4
    $region13: #{_connector_forward.1} parent=1 // pred_fallthru
      _
    // Predicated region
    $region14: #{_connector_forward.1} parent=1 // pred_check
      _
    $region15: #{_connector_forward.1} parent=1 // pred_check_branch
      %175 = sbr.rel (0) target = $region17
    $region16: #{_connector_forward.1} parent=1 // pred_region
      %176 = dma.done [#allocation3], 256
    $region17: #{_connector_forward.1} parent=1 // pred_fallthru
      _
    %177 = vsyncpa [#allocation3], 1

</llo_original>
